<compile_context>
chip_gen: v5e
topology: v5e:2x2
jax: 0.10.0
libtpu: 0.0.40
codegen_flags: <defaults>
</compile_context>

<pallas_src>
import functools

import jax
import jax.numpy as jnp
from jax.experimental import pallas as pl
from jax.experimental.pallas import tpu as pltpu


def ff_kernel(xT_ref, w1s_ref, b1s_ref, w2_ref, b2_ref, w3_ref, b3_ref, o_ref):
    # Transposed layout: columns are batch rows (lane axis), rows are features.
    xT = xT_ref[...]                                   # (D, tile_n)
    D = w2_ref.shape[0]

    # Fused first block layer + linear shortcut: one (2D, D) @ (D, tile_n) matmul.
    hs = jnp.dot(w1s_ref[...], xT,
                 preferred_element_type=jnp.float32) + b1s_ref[...]
    h = jnp.maximum(hs[:D, :], 0.0)                    # layer 1 + ReLU
    s = hs[D:, :]                                      # linear shortcut

    h = jnp.maximum(
        jnp.dot(w2_ref[...], h, preferred_element_type=jnp.float32) + b2_ref[...],
        0.0)
    h = jnp.maximum(
        jnp.dot(w3_ref[...], h, preferred_element_type=jnp.float32) + b3_ref[...],
        0.0)

    o_ref[...] = (h + s).astype(o_ref.dtype)


@functools.partial(jax.jit, static_argnames=("tile_n",))
def ff_forward(x, params, *, tile_n=512):
    """x: (N, D). params: PyTorch-layout weights (out, in) = (D, D), biases (D, 1)."""
    N, D = x.shape

    # Keep the row tile lane-aligned (multiple of 128).
    tile_n = max(128, (tile_n // 128) * 128)

    if N <= 256:
        # Small problem: single untiled block, no pipelining overhead.
        tn = N
    else:
        # Aim for >=2 grid steps (v7x has 2 TensorCores), lane-aligned tile,
        # capped by tile_n (VMEM budget). Partial last tile is masked by Pallas.
        tn = min(tile_n, 128 * pl.cdiv(pl.cdiv(N, 2), 128))
    grid = (pl.cdiv(N, tn),)

    # Fuse first-layer and shortcut weights/biases (both consume the same x tile).
    w1s = jnp.concatenate([params["w1"], params["ws"]], axis=0)   # (2D, D)
    b1s = jnp.concatenate([params["b1"], params["bs"]], axis=0)   # (2D, 1)

    xT = x.T                                                      # (D, N) lane-dense

    # Explicit VMEM budget: double-buffered io tiles + weights + f32 intermediates,
    # with headroom, clamped to 64 MiB (v7x physical VMEM per TensorCore).
    itemsize = jnp.dtype(x.dtype).itemsize
    need = (2 * (2 * D * tn + 4 * D * D + 4 * D) * itemsize       # io tiles + weights (x2 bufs)
            + 4 * D * tn * 4)                                     # f32 intermediates (hs, h)
    vmem_limit = int(min(max(2 * need, 32 << 20), 64 << 20))

    yT = pl.pallas_call(
        ff_kernel,
        out_shape=jax.ShapeDtypeStruct((D, N), x.dtype),
        grid_spec=pl.GridSpec(
            grid=grid,
            in_specs=[
                pl.BlockSpec((D, tn), lambda i: (0, i)),          # x^T tile
                pl.BlockSpec((2 * D, D), lambda i: (0, 0)),       # [W1; Ws]
                pl.BlockSpec((2 * D, 1), lambda i: (0, 0)),       # [b1; bs]
                pl.BlockSpec((D, D), lambda i: (0, 0)),           # W2
                pl.BlockSpec((D, 1), lambda i: (0, 0)),           # b2
                pl.BlockSpec((D, D), lambda i: (0, 0)),           # W3
                pl.BlockSpec((D, 1), lambda i: (0, 0)),           # b3
            ],
            out_specs=pl.BlockSpec((D, tn), lambda i: (0, i)),
        ),
        compiler_params=pltpu.CompilerParams(
            dimension_semantics=("parallel",),
            vmem_limit_bytes=vmem_limit,
        ),
    )(xT, w1s, b1s, params["w2"], params["b2"], params["w3"], params["b3"])

    return yT.T


def init_ff_params(key, input_dim):
    """PyTorch nn.Linear default init: weight, bias ~ U(-1/sqrt(in), 1/sqrt(in)).
    Weights kept in PyTorch (out, in) layout; biases stored as (out, 1)."""
    bound = 1.0 / (input_dim ** 0.5)
    keys = jax.random.split(key, 8)

    def lin(kw, kb):
        w = jax.random.uniform(kw, (input_dim, input_dim), jnp.float32,
                               minval=-bound, maxval=bound)
        b = jax.random.uniform(kb, (input_dim, 1), jnp.float32,
                               minval=-bound, maxval=bound)
        return w, b

    w1, b1 = lin(keys[0], keys[1])
    w2, b2 = lin(keys[2], keys[3])
    w3, b3 = lin(keys[4], keys[5])
    ws, bs = lin(keys[6], keys[7])
    return {"w1": w1, "b1": b1, "w2": w2, "b2": b2,
            "w3": w3, "b3": b3, "ws": ws, "bs": bs}


def ff_reference(x, params):
    """Pure-JAX reference matching PyTorch semantics (y = x @ W.T + b)."""
    def lin(v, w, b):
        return v @ w.T + b[:, 0]
    h = jnp.maximum(lin(x, params["w1"], params["b1"]), 0.0)
    h = jnp.maximum(lin(h, params["w2"], params["b2"]), 0.0)
    h = jnp.maximum(lin(h, params["w3"], params["b3"]), 0.0)
    return h + lin(x, params["ws"], params["bs"])


if __name__ == "__main__":
    key = jax.random.PRNGKey(0)
    kx, kp, kx2 = jax.random.split(key, 3)

    D = 32
    params = init_ff_params(kp, D)

    # Test-scale shape: single untiled block path.
    x_small = jax.random.normal(kx, (8, D), jnp.float32)
    out_small = jax.block_until_ready(ff_forward(x_small, params))
    ref_small = ff_reference(x_small, params)
    assert out_small.shape == (8, D)
    assert jnp.allclose(out_small, ref_small, atol=1e-5, rtol=1e-5), "small mismatch"

    # Moderate shape: exercises the lane-dense tiled path (grid of 2, partial
    # last tile, >=2 grid steps for megacore sharding).
    x_big = jax.random.normal(kx2, (384, D), jnp.float32)
    out_big = jax.block_until_ready(ff_forward(x_big, params))
    ref_big = ff_reference(x_big, params)
    assert out_big.shape == (384, D)
    assert jnp.allclose(out_big, ref_big, atol=1e-4, rtol=1e-4), "tiled mismatch"

    print("KERNEL_OK")
</pallas_src>

<mosaic_0001>
module attributes {stable_mosaic.version = 11 : i64} {
  func.func @ff_kernel(%arg0: i32, %arg1: memref<32x8xf32, #tpu.memory_space<vmem>>, %arg2: memref<64x32xf32, #tpu.memory_space<vmem>>, %arg3: memref<64x1xf32, #tpu.memory_space<vmem>>, %arg4: memref<32x32xf32, #tpu.memory_space<vmem>>, %arg5: memref<32x1xf32, #tpu.memory_space<vmem>>, %arg6: memref<32x32xf32, #tpu.memory_space<vmem>>, %arg7: memref<32x1xf32, #tpu.memory_space<vmem>>, %arg8: memref<32x8xf32, #tpu.memory_space<vmem>>) attributes {dimension_semantics = [#tpu.dimension_semantics<parallel>], iteration_bounds = array<i64: 1>, scalar_prefetch = 0 : i64, scratch_operands = 0 : i64, tpu.core_type = #tpu.core_type<tc>, window_params = [{transform_indices = @transform_0, window_bounds = array<i64: 32, 8>}, {pipeline_mode = #tpu.pipeline_mode<synchronous>, transform_indices = @transform_1, window_bounds = array<i64: 64, 32>}, {pipeline_mode = #tpu.pipeline_mode<synchronous>, transform_indices = @transform_2, window_bounds = array<i64: 64, 1>}, {pipeline_mode = #tpu.pipeline_mode<synchronous>, transform_indices = @transform_3, window_bounds = array<i64: 32, 32>}, {pipeline_mode = #tpu.pipeline_mode<synchronous>, transform_indices = @transform_4, window_bounds = array<i64: 32, 1>}, {pipeline_mode = #tpu.pipeline_mode<synchronous>, transform_indices = @transform_5, window_bounds = array<i64: 32, 32>}, {pipeline_mode = #tpu.pipeline_mode<synchronous>, transform_indices = @transform_6, window_bounds = array<i64: 32, 1>}, {transform_indices = @transform_7, window_bounds = array<i64: 32, 8>}]} {
    %c0 = arith.constant 0 : index
    %c0_0 = arith.constant 0 : index
    %0 = vector.load %arg1[%c0, %c0_0] : memref<32x8xf32, #tpu.memory_space<vmem>>, vector<32x8xf32>
    %c0_1 = arith.constant 0 : index
    %c0_2 = arith.constant 0 : index
    %1 = vector.load %arg2[%c0_1, %c0_2] : memref<64x32xf32, #tpu.memory_space<vmem>>, vector<64x32xf32>
    %cst = arith.constant dense<0.000000e+00> : vector<64x8xf32>
    %2 = tpu.matmul %1, %0, %cst {dimension_numbers = #tpu.dot_dimension_numbers<[1], [0], [0], [1], [0, 0, 1, 1], [], []>} : vector<64x32xf32>, vector<32x8xf32>, vector<64x8xf32> -> vector<64x8xf32>
    %c0_3 = arith.constant 0 : index
    %c0_4 = arith.constant 0 : index
    %3 = vector.load %arg3[%c0_3, %c0_4] : memref<64x1xf32, #tpu.memory_space<vmem>>, vector<64x1xf32>
    %4 = vector.broadcast %3 : vector<64x1xf32> to vector<64x8xf32>
    %5 = arith.addf %2, %4 : vector<64x8xf32>
    %6 = vector.extract_strided_slice %5 {offsets = [0, 0], sizes = [32, 8], strides = [1, 1]} : vector<64x8xf32> to vector<32x8xf32>
    %cst_5 = arith.constant 0.000000e+00 : f32
    %7 = vector.broadcast %cst_5 : f32 to vector<32x8xf32>
    %8 = arith.maximumf %6, %7 : vector<32x8xf32>
    %9 = vector.extract_strided_slice %5 {offsets = [32, 0], sizes = [32, 8], strides = [1, 1]} : vector<64x8xf32> to vector<32x8xf32>
    %c0_6 = arith.constant 0 : index
    %c0_7 = arith.constant 0 : index
    %10 = vector.load %arg4[%c0_6, %c0_7] : memref<32x32xf32, #tpu.memory_space<vmem>>, vector<32x32xf32>
    %cst_8 = arith.constant dense<0.000000e+00> : vector<32x8xf32>
    %11 = tpu.matmul %10, %8, %cst_8 {dimension_numbers = #tpu.dot_dimension_numbers<[1], [0], [0], [1], [0, 0, 1, 1], [], []>} : vector<32x32xf32>, vector<32x8xf32>, vector<32x8xf32> -> vector<32x8xf32>
    %c0_9 = arith.constant 0 : index
    %c0_10 = arith.constant 0 : index
    %12 = vector.load %arg5[%c0_9, %c0_10] : memref<32x1xf32, #tpu.memory_space<vmem>>, vector<32x1xf32>
    %13 = vector.broadcast %12 : vector<32x1xf32> to vector<32x8xf32>
    %14 = arith.addf %11, %13 : vector<32x8xf32>
    %cst_11 = arith.constant 0.000000e+00 : f32
    %15 = vector.broadcast %cst_11 : f32 to vector<32x8xf32>
    %16 = arith.maximumf %14, %15 : vector<32x8xf32>
    %c0_12 = arith.constant 0 : index
    %c0_13 = arith.constant 0 : index
    %17 = vector.load %arg6[%c0_12, %c0_13] : memref<32x32xf32, #tpu.memory_space<vmem>>, vector<32x32xf32>
    %cst_14 = arith.constant dense<0.000000e+00> : vector<32x8xf32>
    %18 = tpu.matmul %17, %16, %cst_14 {dimension_numbers = #tpu.dot_dimension_numbers<[1], [0], [0], [1], [0, 0, 1, 1], [], []>} : vector<32x32xf32>, vector<32x8xf32>, vector<32x8xf32> -> vector<32x8xf32>
    %c0_15 = arith.constant 0 : index
    %c0_16 = arith.constant 0 : index
    %19 = vector.load %arg7[%c0_15, %c0_16] : memref<32x1xf32, #tpu.memory_space<vmem>>, vector<32x1xf32>
    %20 = vector.broadcast %19 : vector<32x1xf32> to vector<32x8xf32>
    %21 = arith.addf %18, %20 : vector<32x8xf32>
    %cst_17 = arith.constant 0.000000e+00 : f32
    %22 = vector.broadcast %cst_17 : f32 to vector<32x8xf32>
    %23 = arith.maximumf %21, %22 : vector<32x8xf32>
    %24 = arith.addf %23, %9 : vector<32x8xf32>
    %c0_18 = arith.constant 0 : index
    %c0_19 = arith.constant 0 : index
    %25 = vector.load %arg8[%c0_18, %c0_19] : memref<32x8xf32, #tpu.memory_space<vmem>>, vector<32x8xf32>
    tpu.vector_store %arg8[%c0_18, %c0_19], %24 {strides = array<i32>} : memref<32x8xf32, #tpu.memory_space<vmem>>, vector<32x8xf32>,
    return
  }
  func.func @transform_0(%arg0: i32) -> (i32, i32) {
    %c0_i32 = arith.constant 0 : i32
    %c0_i32_0 = arith.constant 0 : i32
    return %c0_i32, %arg0 : i32, i32
  }
  func.func @transform_1(%arg0: i32) -> (i32, i32) {
    %c0_i32 = arith.constant 0 : i32
    %c0_i32_0 = arith.constant 0 : i32
    %c0_i32_1 = arith.constant 0 : i32
    return %c0_i32, %c0_i32_0 : i32, i32
  }
  func.func @transform_2(%arg0: i32) -> (i32, i32) {
    %c0_i32 = arith.constant 0 : i32
    %c0_i32_0 = arith.constant 0 : i32
    %c0_i32_1 = arith.constant 0 : i32
    return %c0_i32, %c0_i32_0 : i32, i32
  }
  func.func @transform_3(%arg0: i32) -> (i32, i32) {
    %c0_i32 = arith.constant 0 : i32
    %c0_i32_0 = arith.constant 0 : i32
    %c0_i32_1 = arith.constant 0 : i32
    return %c0_i32, %c0_i32_0 : i32, i32
  }
  func.func @transform_4(%arg0: i32) -> (i32, i32) {
    %c0_i32 = arith.constant 0 : i32
    %c0_i32_0 = arith.constant 0 : i32
    %c0_i32_1 = arith.constant 0 : i32
    return %c0_i32, %c0_i32_0 : i32, i32
  }
  func.func @transform_5(%arg0: i32) -> (i32, i32) {
    %c0_i32 = arith.constant 0 : i32
    %c0_i32_0 = arith.constant 0 : i32
    %c0_i32_1 = arith.constant 0 : i32
    return %c0_i32, %c0_i32_0 : i32, i32
  }
  func.func @transform_6(%arg0: i32) -> (i32, i32) {
    %c0_i32 = arith.constant 0 : i32
    %c0_i32_0 = arith.constant 0 : i32
    %c0_i32_1 = arith.constant 0 : i32
    return %c0_i32, %c0_i32_0 : i32, i32
  }
  func.func @transform_7(%arg0: i32) -> (i32, i32) {
    %c0_i32 = arith.constant 0 : i32
    %c0_i32_0 = arith.constant 0 : i32
    return %c0_i32, %arg0 : i32, i32
  }
}

</mosaic_0001>

<llo_original>
// kernel: ff_forward.1
$region0: #{ff_forward.1}
  #allocation0 [shape = 'u32[]', space=smem, size = 0x4, offset = 0x4, fixed_abs, tag = 'smem constant byte address 0x4 - core index']
  #allocation1 [shape = 'u32[72,128]{1,0:T(1,128)}', space=vmem, size = 0x9000, scoped, tag = 'internal scratch']
  %s0 = inlined_call_operand.vmem [shape: f32[32,8], index: 0, kind: input, shape index: {}]
  %s1 = inlined_call_operand.vmem [shape: f32[64,32], index: 1, kind: input, shape index: {}]
  %s2 = inlined_call_operand.vmem [shape: f32[64,1], index: 2, kind: input, shape index: {}]
  %s3 = inlined_call_operand.vmem [shape: f32[32,32], index: 3, kind: input, shape index: {}]
  %s4 = inlined_call_operand.vmem [shape: f32[32,1], index: 4, kind: input, shape index: {}]
  %s5 = inlined_call_operand.vmem [shape: f32[32,32], index: 5, kind: input, shape index: {}]
  %s6 = inlined_call_operand.vmem [shape: f32[32,1], index: 6, kind: input, shape index: {}]
  %s7 = inlined_call_operand.vmem [shape: f32[32,8], index: 7, kind: output, shape index: {}]
  %s8 = sld [smem:[#allocation0]]
  $region38: #{ff_forward.1} parent=0
    _
  %s10 = ssub.s32 1, %s8
  %s11 = scalar_select 0, %s10, %s8
  // Predicated region
  $region2: #{ff_forward.1} parent=0 // pred_check
    _
  $region3: #{ff_forward.1} parent=0 // pred_check_branch
    %13 = sbr.rel (0) target = $region5
  $region4: #{ff_forward.1} parent=0 // pred_region
    _
  $region5: #{ff_forward.1} parent=0 // pred_fallthru
    _
  // Predicated region
  $region6: #{ff_forward.1} parent=0 // pred_check
    _
  $region7: #{ff_forward.1} parent=0 // pred_check_branch
    %15 = sbr.rel (0) target = $region9
  $region8: #{ff_forward.1} parent=0 // pred_region
    _
  $region9: #{ff_forward.1} parent=0 // pred_fallthru
    _
  // Predicated region
  $region10: #{ff_forward.1} parent=0 // pred_check
    _
  $region11: #{ff_forward.1} parent=0 // pred_check_branch
    %17 = sbr.rel (0) target = $region13
  $region12: #{ff_forward.1} parent=0 // pred_region
    _
  $region13: #{ff_forward.1} parent=0 // pred_fallthru
    _
  // Predicated region
  $region14: #{ff_forward.1} parent=0 // pred_check
    _
  $region15: #{ff_forward.1} parent=0 // pred_check_branch
    %19 = sbr.rel (0) target = $region17
  $region16: #{ff_forward.1} parent=0 // pred_region
    _
  $region17: #{ff_forward.1} parent=0 // pred_fallthru
    _
  // Predicated region
  $region18: #{ff_forward.1} parent=0 // pred_check
    _
  $region19: #{ff_forward.1} parent=0 // pred_check_branch
    %21 = sbr.rel (0) target = $region21
  $region20: #{ff_forward.1} parent=0 // pred_region
    _
  $region21: #{ff_forward.1} parent=0 // pred_fallthru
    _
  // Predicated region
  $region22: #{ff_forward.1} parent=0 // pred_check
    _
  $region23: #{ff_forward.1} parent=0 // pred_check_branch
    %23 = sbr.rel (0) target = $region25
  $region24: #{ff_forward.1} parent=0 // pred_region
    _
  $region25: #{ff_forward.1} parent=0 // pred_fallthru
    _
  // Predicated region
  $region26: #{ff_forward.1} parent=0 // pred_check
    _
  $region27: #{ff_forward.1} parent=0 // pred_check_branch
    %25 = sbr.rel (0) target = $region29
  $region28: #{ff_forward.1} parent=0 // pred_region
    _
  $region29: #{ff_forward.1} parent=0 // pred_fallthru
    _
  %v26 = vld [vmem:[%s0] sm:$0xff]
  %v27 = vld [vmem:[%s0 + $0x8] sm:$0xff]
  %v28 = vld [vmem:[%s0 + $0x10] sm:$0xff]
  %v29 = vld [vmem:[%s0 + $0x18] sm:$0xff]
  %v30 = vld [vmem:[%s1] sm:$0xff]
  %v31 = vld [vmem:[%s1 + $0x8] sm:$0xff]
  %v32 = vld [vmem:[%s1 + $0x10] sm:$0xff]
  %v33 = vld [vmem:[%s1 + $0x18] sm:$0xff]
  %v34 = vld [vmem:[%s1 + $0x20] sm:$0xff]
  %v35 = vld [vmem:[%s1 + $0x28] sm:$0xff]
  %v36 = vld [vmem:[%s1 + $0x30] sm:$0xff]
  %v37 = vld [vmem:[%s1 + $0x38] sm:$0xff]
  %v38 = vld [vmem:[%s2] sm:$0xff]
  %v39 = vld [vmem:[%s2 + $0x8] sm:$0xff]
  %v40 = vld [vmem:[%s2 + $0x10] sm:$0xff]
  %v41 = vld [vmem:[%s2 + $0x18] sm:$0xff]
  %v42 = vld [vmem:[%s2 + $0x20] sm:$0xff]
  %v43 = vld [vmem:[%s2 + $0x28] sm:$0xff]
  %v44 = vld [vmem:[%s2 + $0x30] sm:$0xff]
  %v45 = vld [vmem:[%s2 + $0x38] sm:$0xff]
  %47 = vset.pattern.permute.xlu0 0
  %48 = vperm.xlu0 %47, %v38
  %v49 = vpop.permute.xlu0 %48
  %52 = vset.pattern.permute.xlu0 0
  %53 = vperm.xlu0 %52, %v39
  %v54 = vpop.permute.xlu0 %53
  %57 = vset.pattern.permute.xlu0 0
  %58 = vperm.xlu0 %57, %v40
  %v59 = vpop.permute.xlu0 %58
  %62 = vset.pattern.permute.xlu0 0
  %63 = vperm.xlu0 %62, %v41
  %v64 = vpop.permute.xlu0 %63
  %67 = vset.pattern.permute.xlu0 0
  %68 = vperm.xlu0 %67, %v42
  %v69 = vpop.permute.xlu0 %68
  %72 = vset.pattern.permute.xlu0 0
  %73 = vperm.xlu0 %72, %v43
  %v74 = vpop.permute.xlu0 %73
  %77 = vset.pattern.permute.xlu0 0
  %78 = vperm.xlu0 %77, %v44
  %v79 = vpop.permute.xlu0 %78
  %82 = vset.pattern.permute.xlu0 0
  %83 = vperm.xlu0 %82, %v45
  %v84 = vpop.permute.xlu0 %83
  %vm86 = vcmask 261120
  %v88 = vsel %vm86, %v30, 0
  %v91 = vsel %vm86, %v31, 0
  %v94 = vsel %vm86, %v32, 0
  %v97 = vsel %vm86, %v33, 0
  %v100 = vsel %vm86, %v34, 0
  %v103 = vsel %vm86, %v35, 0
  %v106 = vsel %vm86, %v36, 0
  %v109 = vsel %vm86, %v37, 0
  %111 = vmatpush.msra.mxu0 0.0
  %112 = vmatpush.msra.mxu0 0.0
  %113 = vmatpush.msra.mxu0 0.0
  %114 = vmatpush.msra.mxu0 0.0
  %115 = vmatpush.msra.mxu0 0.0
  %116 = vmatpush.msra.mxu0 0.0
  %117 = vmatpush.msra.mxu0 0.0
  %118 = vmatpush.msra.mxu0 0.0
  %119 = vmatpush.msra.mxu0 0.0
  %120 = vmatpush.msra.mxu0 0.0
  %121 = vmatpush.msra.mxu0 0.0
  %122 = vmatpush.msra.mxu0 0.0
  %123 = vmatpush.msra.mxu0 %v29
  %124 = vmatpush.msra.mxu0 %v28
  %125 = vmatpush.msra.mxu0 %v27
  %126 = vmatpush.msra.mxu0 %v26
  %127 = vmatmul.f32.gmra.mxu0 %v88
  %v128 = vpop.f32.mrf.mxu0
  %v129 = vadd.f32 %v49, %v128
  %130 = vmatmul.f32.gmra.mxu0 %v91
  %v131 = vpop.f32.mrf.mxu0
  %v132 = vadd.f32 %v54, %v131
  %133 = vmatmul.f32.gmra.mxu0 %v94
  %v134 = vpop.f32.mrf.mxu0
  %v135 = vadd.f32 %v59, %v134
  %136 = vmatmul.f32.gmra.mxu0 %v97
  %v137 = vpop.f32.mrf.mxu0
  %v138 = vadd.f32 %v64, %v137
  %139 = vmatmul.f32.gmra.mxu0 %v100
  %v140 = vpop.f32.mrf.mxu0
  %v141 = vadd.f32 %v69, %v140
  %142 = vmatmul.f32.gmra.mxu0 %v103
  %v143 = vpop.f32.mrf.mxu0
  %v144 = vadd.f32 %v74, %v143
  %145 = vmatmul.f32.gmra.mxu0 %v106
  %v146 = vpop.f32.mrf.mxu0
  %v147 = vadd.f32 %v79, %v146
  %148 = vmatmul.f32.gmra.mxu0 %v109
  %v149 = vpop.f32.mrf.mxu0
  %v150 = vadd.f32 %v84, %v149
  %151 = vdwg.mxu0
  %v152 = vmax.f32 %v129, 0.0
  %v153 = vmax.f32 %v132, 0.0
  %v154 = vmax.f32 %v135, 0.0
  %v155 = vmax.f32 %v138, 0.0
  %v156 = vld [vmem:[%s3] sm:$0xff]
  %v157 = vld [vmem:[%s3 + $0x8] sm:$0xff]
  %v158 = vld [vmem:[%s3 + $0x10] sm:$0xff]
  %v159 = vld [vmem:[%s3 + $0x18] sm:$0xff]
  %v160 = vld [vmem:[%s4] sm:$0xff]
  %v161 = vld [vmem:[%s4 + $0x8] sm:$0xff]
  %v162 = vld [vmem:[%s4 + $0x10] sm:$0xff]
  %v163 = vld [vmem:[%s4 + $0x18] sm:$0xff]
  %165 = vset.pattern.permute.xlu0 0
  %166 = vperm.xlu0 %165, %v160
  %v167 = vpop.permute.xlu0 %166
  %170 = vset.pattern.permute.xlu0 0
  %171 = vperm.xlu0 %170, %v161
  %v172 = vpop.permute.xlu0 %171
  %175 = vset.pattern.permute.xlu0 0
  %176 = vperm.xlu0 %175, %v162
  %v177 = vpop.permute.xlu0 %176
  %180 = vset.pattern.permute.xlu0 0
  %181 = vperm.xlu0 %180, %v163
  %v182 = vpop.permute.xlu0 %181
  %v185 = vsel %vm86, %v156, 0
  %v188 = vsel %vm86, %v157, 0
  %v191 = vsel %vm86, %v158, 0
  %v194 = vsel %vm86, %v159, 0
  %196 = vmatpush.msra.mxu0 0.0
  %197 = vmatpush.msra.mxu0 0.0
  %198 = vmatpush.msra.mxu0 0.0
  %199 = vmatpush.msra.mxu0 0.0
  %200 = vmatpush.msra.mxu0 0.0
  %201 = vmatpush.msra.mxu0 0.0
  %202 = vmatpush.msra.mxu0 0.0
  %203 = vmatpush.msra.mxu0 0.0
  %204 = vmatpush.msra.mxu0 0.0
  %205 = vmatpush.msra.mxu0 0.0
  %206 = vmatpush.msra.mxu0 0.0
  %207 = vmatpush.msra.mxu0 0.0
  %208 = vmatpush.msra.mxu0 %v155
  %209 = vmatpush.msra.mxu0 %v154
  %210 = vmatpush.msra.mxu0 %v153
  %211 = vmatpush.msra.mxu0 %v152
  %212 = vmatmul.f32.gmra.mxu0 %v185
  %v213 = vpop.f32.mrf.mxu0
  %v214 = vadd.f32 %v167, %v213
  %215 = vmatmul.f32.gmra.mxu0 %v188
  %v216 = vpop.f32.mrf.mxu0
  %v217 = vadd.f32 %v172, %v216
  %218 = vmatmul.f32.gmra.mxu0 %v191
  %v219 = vpop.f32.mrf.mxu0
  %v220 = vadd.f32 %v177, %v219
  %221 = vmatmul.f32.gmra.mxu0 %v194
  %v222 = vpop.f32.mrf.mxu0
  %v223 = vadd.f32 %v182, %v222
  %224 = vdwg.mxu0
  %v225 = vmax.f32 %v214, 0.0
  %v226 = vmax.f32 %v217, 0.0
  %v227 = vmax.f32 %v220, 0.0
  %v228 = vmax.f32 %v223, 0.0
  %v229 = vld [vmem:[%s5] sm:$0xff]
  %v230 = vld [vmem:[%s5 + $0x8] sm:$0xff]
  %v231 = vld [vmem:[%s5 + $0x10] sm:$0xff]
  %v232 = vld [vmem:[%s5 + $0x18] sm:$0xff]
  %v233 = vld [vmem:[%s6] sm:$0xff]
  %v234 = vld [vmem:[%s6 + $0x8] sm:$0xff]
  %v235 = vld [vmem:[%s6 + $0x10] sm:$0xff]
  %v236 = vld [vmem:[%s6 + $0x18] sm:$0xff]
  %238 = vset.pattern.permute.xlu0 0
  %239 = vperm.xlu0 %238, %v233
  %v240 = vpop.permute.xlu0 %239
  %243 = vset.pattern.permute.xlu0 0
  %244 = vperm.xlu0 %243, %v234
  %v245 = vpop.permute.xlu0 %244
  %248 = vset.pattern.permute.xlu0 0
  %249 = vperm.xlu0 %248, %v235
  %v250 = vpop.permute.xlu0 %249
  %253 = vset.pattern.permute.xlu0 0
  %254 = vperm.xlu0 %253, %v236
  %v255 = vpop.permute.xlu0 %254
  %v258 = vsel %vm86, %v229, 0
  %v261 = vsel %vm86, %v230, 0
  %v264 = vsel %vm86, %v231, 0
  %v267 = vsel %vm86, %v232, 0
  %269 = vmatpush.msra.mxu0 0.0
  %270 = vmatpush.msra.mxu0 0.0
  %271 = vmatpush.msra.mxu0 0.0
  %272 = vmatpush.msra.mxu0 0.0
  %273 = vmatpush.msra.mxu0 0.0
  %274 = vmatpush.msra.mxu0 0.0
  %275 = vmatpush.msra.mxu0 0.0
  %276 = vmatpush.msra.mxu0 0.0
  %277 = vmatpush.msra.mxu0 0.0
  %278 = vmatpush.msra.mxu0 0.0
  %279 = vmatpush.msra.mxu0 0.0
  %280 = vmatpush.msra.mxu0 0.0
  %281 = vmatpush.msra.mxu0 %v228
  %282 = vmatpush.msra.mxu0 %v227
  %283 = vmatpush.msra.mxu0 %v226
  %284 = vmatpush.msra.mxu0 %v225
  %285 = vmatmul.f32.gmra.mxu0 %v258
  %v286 = vpop.f32.mrf.mxu0
  %v287 = vadd.f32 %v240, %v286
  %288 = vmatmul.f32.gmra.mxu0 %v261
  %v289 = vpop.f32.mrf.mxu0
  %v290 = vadd.f32 %v245, %v289
  %291 = vmatmul.f32.gmra.mxu0 %v264
  %v292 = vpop.f32.mrf.mxu0
  %v293 = vadd.f32 %v250, %v292
  %294 = vmatmul.f32.gmra.mxu0 %v267
  %v295 = vpop.f32.mrf.mxu0
  %v296 = vadd.f32 %v255, %v295
  %297 = vdwg.mxu0
  %v298 = vmax.f32 %v287, 0.0
  %v299 = vmax.f32 %v290, 0.0
  %v300 = vmax.f32 %v293, 0.0
  %v301 = vmax.f32 %v296, 0.0
  %v302 = vadd.f32 %v298, %v141
  %v303 = vadd.f32 %v299, %v144
  %v304 = vadd.f32 %v300, %v147
  %v305 = vadd.f32 %v301, %v150
  %vm306 = vcmask 64512
  %307 = vst.msk [vmem:[%s7] sm:$0xff] %vm306, %v302
  %308 = vst.msk [vmem:[%s7 + $0x8] sm:$0xff] %vm306, %v303
  %309 = vst.msk [vmem:[%s7 + $0x10] sm:$0xff] %vm306, %v304
  %310 = vst.msk [vmem:[%s7 + $0x18] sm:$0xff] %vm306, %v305
  // Predicated region
  $region30: #{ff_forward.1} parent=0 // pred_check
    _
  $region31: #{ff_forward.1} parent=0 // pred_check_branch
    %312 = sbr.rel (0) target = $region33
  $region32: #{ff_forward.1} parent=0 // pred_region
    _
  $region33: #{ff_forward.1} parent=0 // pred_fallthru
    _
  // Predicated region
  $region34: #{ff_forward.1} parent=0 // pred_check
    _
  $region35: #{ff_forward.1} parent=0 // pred_check_branch
    %314 = sbr.rel (0) target = $region37
  $region36: #{ff_forward.1} parent=0 // pred_region
    _
  $region37: #{ff_forward.1} parent=0 // pred_fallthru
    _

</llo_original>
